<compile_context>
chip_gen: v7x
topology: tpu7x:2x2x1
jax: 0.10.0
libtpu: 0.0.40
codegen_flags: <defaults>
</compile_context>

<pallas_src>
import functools
import math

import jax
import jax.numpy as jnp
from jax.experimental import pallas as pl
from jax.experimental.pallas import tpu as pltpu

_LANES = 256            # lane-dense width (multiple of 128 -> unmasked vst)
_MAX_BLOCK_ROWS = 1024  # 1024 x 256 x 4B = 1 MiB per block


def _hash32(x):
    """lowbias32 integer finalizer: cheap, good avalanche. x: uint32 array."""
    x = x ^ (x >> 16)
    x = x * jnp.uint32(0x7FEB352D)
    x = x ^ (x >> 15)
    x = x * jnp.uint32(0x846CA68B)
    x = x ^ (x >> 16)
    return x


def _bits_to_unit_float(bits):
    """uint32 -> float32 in [1, 2) via exponent-bit trick (bitcast, no int->fp convert)."""
    mant = (bits >> 9) | jnp.uint32(0x3F800000)
    return jax.lax.bitcast_convert_type(mant, jnp.float32)


def _gaussian_noise_kernel(x_ref, o_ref, *, stddev, key1, key2):
    block_rows, lanes = x_ref.shape
    half = lanes // 2  # 128 -> lane-aligned split

    # Unique per-element-pair counter across the whole (padded) array.
    pid = pl.program_id(0)
    row = jax.lax.broadcasted_iota(jnp.int32, (block_rows, half), 0).astype(jnp.uint32)
    col = jax.lax.broadcasted_iota(jnp.int32, (block_rows, half), 1).astype(jnp.uint32)
    row_start = (pid * block_rows).astype(jnp.uint32)
    ctr = (row_start + row) * jnp.uint32(half) + col

    # Two independent uniform streams from one counter.
    bits1 = _hash32(ctr ^ jnp.uint32(key1))
    bits2 = _hash32(ctr ^ jnp.uint32(key2))
    u1 = 2.0 - _bits_to_unit_float(bits1)   # (0, 1]  -> log is finite
    u2 = _bits_to_unit_float(bits2) - 1.0   # [0, 1)

    # Box-Muller: use BOTH outputs (cos half / sin half of the tile).
    r = jnp.sqrt(-2.0 * jnp.log(u1))
    theta = (2.0 * math.pi) * u2
    z_cos = r * jnp.cos(theta)
    z_sin = r * jnp.sin(theta)

    out_dtype = o_ref.dtype
    xl = x_ref[:, :half].astype(jnp.float32)
    xr = x_ref[:, half:].astype(jnp.float32)
    o_ref[:, :half] = (xl + stddev * z_cos).astype(out_dtype)
    o_ref[:, half:] = (xr + stddev * z_sin).astype(out_dtype)


def gaussian_noise(din, stddev, *, seed=0, training=True):
    """Forward pass of GaussianNoise.

    training=True  -> din + randn(din.shape) * stddev (noise generated in-kernel)
    training=False -> din (identity, no kernel launch)
    """
    if not training:
        return din

    orig_shape = din.shape
    orig_dtype = din.dtype
    n = int(din.size)

    rows = -(-n // _LANES)
    if rows <= _MAX_BLOCK_ROWS:
        block_rows = ((rows + 7) // 8) * 8        # single block covering everything
        padded_rows = block_rows
    else:
        block_rows = _MAX_BLOCK_ROWS
        padded_rows = ((rows + block_rows - 1) // block_rows) * block_rows
    padded_n = padded_rows * _LANES
    grid = (padded_rows // block_rows,)

    flat = din.reshape(-1)
    needs_pad = padded_n != n
    if needs_pad:
        flat = jnp.pad(flat, (0, padded_n - n))
    x2d = flat.reshape(padded_rows, _LANES)

    # Static per-call keys derived from the seed (decorrelates the two hash streams).
    key1 = (seed * 0x9E3779B1 + 0x85EBCA6B) & 0xFFFFFFFF
    key2 = (seed * 0xC2B2AE3D + 0x27D4EB2F) & 0xFFFFFFFF

    kernel = functools.partial(
        _gaussian_noise_kernel, stddev=float(stddev), key1=key1, key2=key2)

    out2d = pl.pallas_call(
        kernel,
        out_shape=jax.ShapeDtypeStruct((padded_rows, _LANES), orig_dtype),
        grid=grid,
        in_specs=[pl.BlockSpec((block_rows, _LANES), lambda i: (i, 0))],
        out_specs=pl.BlockSpec((block_rows, _LANES), lambda i: (i, 0)),
        compiler_params=pltpu.CompilerParams(
            dimension_semantics=("parallel",),  # blocks independent: counter-based PRNG
        ),
    )(x2d)

    out = out2d.reshape(-1)
    if needs_pad:
        out = out[:n]
    return out.reshape(orig_shape)


if __name__ == "__main__":
    key = jax.random.PRNGKey(0)
    # NCHW input: batch=2, channels=4, 16x16 spatial (2048 elements -> tile-aligned fast path).
    x = jax.random.normal(key, (2, 4, 16, 16), dtype=jnp.float32)
    stddev = 0.1

    # Training path (adds noise) — the hot path implemented in Pallas.
    y_train = gaussian_noise(x, stddev, seed=0, training=True)
    y_train = jax.block_until_ready(y_train)
    assert y_train.shape == x.shape and y_train.dtype == x.dtype

    # Sanity: noise should be ~N(0, stddev^2).
    diff = y_train - x
    diff_std = float(jnp.std(diff))
    diff_mean = float(jnp.mean(diff))
    assert 0.07 < diff_std < 0.13, f"unexpected noise std {diff_std}"
    assert abs(diff_mean) < 0.02, f"unexpected noise mean {diff_mean}"
    assert bool(jnp.all(jnp.isfinite(y_train)))

    # Eval path is the identity.
    y_eval = gaussian_noise(x, stddev, training=False)
    y_eval = jax.block_until_ready(y_eval)
    assert bool(jnp.all(y_eval == x))

    print("KERNEL_OK")
</pallas_src>

<mosaic_0001>
module attributes {stable_mosaic.version = 11 : i64} {
  func.func @_gaussian_noise_kernel(%arg0: i32, %arg1: memref<8x256xf32, #tpu.memory_space<vmem>>, %arg2: memref<8x256xf32, #tpu.memory_space<vmem>>) attributes {dimension_semantics = [#tpu.dimension_semantics<parallel>], iteration_bounds = array<i64: 1>, scalar_prefetch = 0 : i64, scratch_operands = 0 : i64, tpu.core_type = #tpu.core_type<tc>, window_params = [{transform_indices = @transform_0, window_bounds = array<i64: 8, 256>}, {transform_indices = @transform_1, window_bounds = array<i64: 8, 256>}]} {
    %0 = tpu.iota {dimensions = array<i32: 0>} : vector<8x128xi32>
    %1 = tpu.iota {dimensions = array<i32: 1>} : vector<8x128xi32>
    %c8_i32 = arith.constant 8 : i32
    %2 = arith.muli %arg0, %c8_i32 : i32
    %3 = vector.broadcast %2 : i32 to vector<8x128xi32>
    %4 = arith.addi %3, %0 : vector<8x128xi32>
    %c128_i32 = arith.constant 128 : i32
    %5 = vector.broadcast %c128_i32 : i32 to vector<8x128xi32>
    %6 = arith.muli %4, %5 : vector<8x128xi32>
    %7 = arith.addi %6, %1 : vector<8x128xi32>
    %c-2048144789_i32 = arith.constant -2048144789 : i32
    %8 = vector.broadcast %c-2048144789_i32 : i32 to vector<8x128xi32>
    %9 = arith.xori %7, %8 : vector<8x128xi32>
    %c16_i32 = arith.constant 16 : i32
    %10 = vector.broadcast %c16_i32 : i32 to vector<8x128xi32>
    %11 = arith.shrui %9, %10 : vector<8x128xi32>
    %12 = arith.xori %9, %11 : vector<8x128xi32>
    %c2146121005_i32 = arith.constant 2146121005 : i32
    %13 = vector.broadcast %c2146121005_i32 : i32 to vector<8x128xi32>
    %14 = arith.muli %12, %13 : vector<8x128xi32>
    %c15_i32 = arith.constant 15 : i32
    %15 = vector.broadcast %c15_i32 : i32 to vector<8x128xi32>
    %16 = arith.shrui %14, %15 : vector<8x128xi32>
    %17 = arith.xori %14, %16 : vector<8x128xi32>
    %c-2073254261_i32 = arith.constant -2073254261 : i32
    %18 = vector.broadcast %c-2073254261_i32 : i32 to vector<8x128xi32>
    %19 = arith.muli %17, %18 : vector<8x128xi32>
    %c16_i32_0 = arith.constant 16 : i32
    %20 = vector.broadcast %c16_i32_0 : i32 to vector<8x128xi32>
    %21 = arith.shrui %19, %20 : vector<8x128xi32>
    %22 = arith.xori %19, %21 : vector<8x128xi32>
    %c668265263_i32 = arith.constant 668265263 : i32
    %23 = vector.broadcast %c668265263_i32 : i32 to vector<8x128xi32>
    %24 = arith.xori %7, %23 : vector<8x128xi32>
    %c16_i32_1 = arith.constant 16 : i32
    %25 = vector.broadcast %c16_i32_1 : i32 to vector<8x128xi32>
    %26 = arith.shrui %24, %25 : vector<8x128xi32>
    %27 = arith.xori %24, %26 : vector<8x128xi32>
    %c2146121005_i32_2 = arith.constant 2146121005 : i32
    %28 = vector.broadcast %c2146121005_i32_2 : i32 to vector<8x128xi32>
    %29 = arith.muli %27, %28 : vector<8x128xi32>
    %c15_i32_3 = arith.constant 15 : i32
    %30 = vector.broadcast %c15_i32_3 : i32 to vector<8x128xi32>
    %31 = arith.shrui %29, %30 : vector<8x128xi32>
    %32 = arith.xori %29, %31 : vector<8x128xi32>
    %c-2073254261_i32_4 = arith.constant -2073254261 : i32
    %33 = vector.broadcast %c-2073254261_i32_4 : i32 to vector<8x128xi32>
    %34 = arith.muli %32, %33 : vector<8x128xi32>
    %c16_i32_5 = arith.constant 16 : i32
    %35 = vector.broadcast %c16_i32_5 : i32 to vector<8x128xi32>
    %36 = arith.shrui %34, %35 : vector<8x128xi32>
    %37 = arith.xori %34, %36 : vector<8x128xi32>
    %c9_i32 = arith.constant 9 : i32
    %38 = vector.broadcast %c9_i32 : i32 to vector<8x128xi32>
    %39 = arith.shrui %22, %38 : vector<8x128xi32>
    %c1065353216_i32 = arith.constant 1065353216 : i32
    %40 = vector.broadcast %c1065353216_i32 : i32 to vector<8x128xi32>
    %41 = arith.ori %39, %40 : vector<8x128xi32>
    %42 = tpu.bitcast %41 : vector<8x128xi32> -> vector<8x128xf32>
    %cst = arith.constant 2.000000e+00 : f32
    %43 = vector.broadcast %cst : f32 to vector<8x128xf32>
    %44 = arith.subf %43, %42 : vector<8x128xf32>
    %c9_i32_6 = arith.constant 9 : i32
    %45 = vector.broadcast %c9_i32_6 : i32 to vector<8x128xi32>
    %46 = arith.shrui %37, %45 : vector<8x128xi32>
    %c1065353216_i32_7 = arith.constant 1065353216 : i32
    %47 = vector.broadcast %c1065353216_i32_7 : i32 to vector<8x128xi32>
    %48 = arith.ori %46, %47 : vector<8x128xi32>
    %49 = tpu.bitcast %48 : vector<8x128xi32> -> vector<8x128xf32>
    %cst_8 = arith.constant 1.000000e+00 : f32
    %50 = vector.broadcast %cst_8 : f32 to vector<8x128xf32>
    %51 = arith.subf %49, %50 : vector<8x128xf32>
    %52 = math.log %44 : vector<8x128xf32>
    %cst_9 = arith.constant -2.000000e+00 : f32
    %53 = vector.broadcast %cst_9 : f32 to vector<8x128xf32>
    %54 = arith.mulf %53, %52 : vector<8x128xf32>
    %55 = math.sqrt %54 : vector<8x128xf32>
    %cst_10 = arith.constant 6.28318548 : f32
    %56 = vector.broadcast %cst_10 : f32 to vector<8x128xf32>
    %57 = arith.mulf %56, %51 : vector<8x128xf32>
    %58 = math.cos %57 : vector<8x128xf32>
    %59 = arith.mulf %55, %58 : vector<8x128xf32>
    %60 = math.sin %57 : vector<8x128xf32>
    %61 = arith.mulf %55, %60 : vector<8x128xf32>
    %c0 = arith.constant 0 : index
    %c0_11 = arith.constant 0 : index
    %62 = vector.load %arg1[%c0, %c0_11] : memref<8x256xf32, #tpu.memory_space<vmem>>, vector<8x128xf32>
    %c0_12 = arith.constant 0 : index
    %c128 = arith.constant 128 : index
    %63 = vector.load %arg1[%c0_12, %c128] : memref<8x256xf32, #tpu.memory_space<vmem>>, vector<8x128xf32>
    %cst_13 = arith.constant 1.000000e-01 : f32
    %64 = vector.broadcast %cst_13 : f32 to vector<8x128xf32>
    %65 = arith.mulf %64, %59 : vector<8x128xf32>
    %66 = arith.addf %62, %65 : vector<8x128xf32>
    %c0_14 = arith.constant 0 : index
    %c0_15 = arith.constant 0 : index
    %67 = vector.load %arg2[%c0_14, %c0_15] : memref<8x256xf32, #tpu.memory_space<vmem>>, vector<8x128xf32>
    tpu.vector_store %arg2[%c0_14, %c0_15], %66 {strides = array<i32>} : memref<8x256xf32, #tpu.memory_space<vmem>>, vector<8x128xf32>,
    %cst_16 = arith.constant 1.000000e-01 : f32
    %68 = vector.broadcast %cst_16 : f32 to vector<8x128xf32>
    %69 = arith.mulf %68, %61 : vector<8x128xf32>
    %70 = arith.addf %63, %69 : vector<8x128xf32>
    %c0_17 = arith.constant 0 : index
    %c128_18 = arith.constant 128 : index
    %71 = vector.load %arg2[%c0_17, %c128_18] : memref<8x256xf32, #tpu.memory_space<vmem>>, vector<8x128xf32>
    tpu.vector_store %arg2[%c0_17, %c128_18], %70 {strides = array<i32>} : memref<8x256xf32, #tpu.memory_space<vmem>>, vector<8x128xf32>,
    return
  }
  func.func @transform_0(%arg0: i32) -> (i32, i32) {
    %c0_i32 = arith.constant 0 : i32
    %c0_i32_0 = arith.constant 0 : i32
    return %arg0, %c0_i32 : i32, i32
  }
  func.func @transform_1(%arg0: i32) -> (i32, i32) {
    %c0_i32 = arith.constant 0 : i32
    %c0_i32_0 = arith.constant 0 : i32
    return %arg0, %c0_i32 : i32, i32
  }
}

</mosaic_0001>

<llo_original>
// kernel: tpu_custom_call.1
$region0: #{tpu_custom_call.1}
  #allocation0 [shape = 'u32[]', space=smem, size = 0x4, offset = 0x4, fixed_abs, tag = 'smem constant byte address 0x4 - core index']
  #allocation1 [shape = 'u32[144,128]{1,0:T(1,128)}', space=vmem, size = 0x12000, scoped, tag = 'internal scratch']
  %s0 = inlined_call_operand.hbm [shape: f32[8,256], index: 0, kind: input, shape index: {}]
  %s1 = inlined_call_operand.hbm [shape: f32[8,256], index: 1, kind: output, shape index: {}]
  %s2 = sld [smem:[#allocation0]]
  $region18: #{tpu_custom_call.1} parent=0
    _
  %s4 = ssub.s32 1, %s2
  %s5 = scalar_select 0, %s4, %s2
  $region1: #{tpu_custom_call.1} parent=0
    #allocation2 [shape = 'u8[8192]{0}', space=vmem, size = 0x2000, scoped, tag = 'input window, operand 0, single buffered']
    #allocation3 [shape = 's32[1]{0}', space=sflag, size = 0x4, scoped, tag = 'scoped memory for tpu_custom_call.1']
    #allocation4 [shape = 's32[1]{0}', space=sflag, size = 0x4, scoped, tag = 'scoped memory for tpu_custom_call.1']
    #allocation5 [shape = 'u8[8192]{0}', space=vmem, size = 0x2000, scoped, tag = 'output window, operand 0, single buffered']
    %6 = vsyncpa [#allocation3], 0
    %7 = vsyncpa [#allocation4], 0
    // Predicated region
    $region2: #{tpu_custom_call.1} parent=1 // pred_check
      _
    $region3: #{tpu_custom_call.1} parent=1 // pred_check_branch
      %9 = sbr.rel (0) target = $region5
    $region4: #{tpu_custom_call.1} parent=1 // pred_region
      %s11 = ssub.s32 256, 256
      %12 = vsyncadd [#allocation3], %s11
      %s14 = sshll.u32 [#allocation2], 4
      %s15 = int_to_ptr.vmem [resolvable:$true] %s14
      %17 = dma.hbm_to_vmem [thread:$0]  %s0, 256, %s15, [#allocation3]
    $region5: #{tpu_custom_call.1} parent=1 // pred_fallthru
      _
    // Predicated region
    $region6: #{tpu_custom_call.1} parent=1 // pred_check
      _
    $region7: #{tpu_custom_call.1} parent=1 // pred_check_branch
      %19 = sbr.rel (0) target = $region9
    $region8: #{tpu_custom_call.1} parent=1 // pred_region
      %20 = dma.done [#allocation3], 256
    $region9: #{tpu_custom_call.1} parent=1 // pred_fallthru
      _
    %v21 = vlaneseq
    %v22 = vshrl.u32 %v21, 7
    %v23 = vlaneseq
    %v24 = vand.u32 %v23, 127
    %s25 = smul.u32 0, 8
    %v26 = vstv %s25
    %v27 = vadd.s32 %v26, %v22
    %v28 = vmul.u32 %v27, 128
    %v29 = vadd.s32 %v28, %v24
    %v30 = vxor.u32 %v29, 2246822507
    %v31 = vshrl.u32 %v30, 16
    %v32 = vxor.u32 %v30, %v31
    %v33 = vmul.u32 %v32, 2146121005
    %v34 = vshrl.u32 %v33, 15
    %v35 = vxor.u32 %v33, %v34
    %v36 = vmul.u32 %v35, 2221713035
    %v37 = vshrl.u32 %v36, 16
    %v38 = vxor.u32 %v36, %v37
    %v39 = vxor.u32 %v29, 668265263
    %v40 = vshrl.u32 %v39, 16
    %v41 = vxor.u32 %v39, %v40
    %v42 = vmul.u32 %v41, 2146121005
    %v43 = vshrl.u32 %v42, 15
    %v44 = vxor.u32 %v42, %v43
    %v45 = vmul.u32 %v44, 2221713035
    %v46 = vshrl.u32 %v45, 16
    %v47 = vxor.u32 %v45, %v46
    %v48 = vshrl.u32 %v38, 9
    %v49 = vor.u32 %v48, 1065353216
    %v51 = vsub.f32 2.0, %v49
    %v52 = vshrl.u32 %v47, 9
    %v53 = vor.u32 %v52, 1065353216
    %v55 = vsub.f32 %v53, 1.0
    %v56 = vlog2.pop %v51
    %v57 = vmul.f32 %v56, 0.6931472
    %v58 = vmul.f32 %v57, -2.0
    %v59 = vrsqrt.pop %v58
    %v60 = vmul.f32 %v58, %v59
    %vm61 = vcmp.eq.f32.partialorder %v58, inf
    %v62 = vsel %vm61, %v58, %v60
    %vm63 = vcmp.eq.f32.partialorder %v58, 0.0
    %v64 = vand.u32 %v58, 2147483648
    %v65 = vsel %vm63, %v64, %v62
    %v66 = vmul.f32 %v55, 6.2831855
    %v67 = vand.u32 2147483647, %v66
    %vm68 = vcmp.le.f32.partialorder %v67, 0.7853982
    %vm69 = vcmp.lt.s32.totalorder %v66, 0
    %v70 = vand.u32 %v66, 2139095040
    %v71 = vshrl.u32 %v70, 23
    %v72 = vsub.s32 %v71, 127
    %v73 = vand.u32 2147483647, %v66
    %v74 = vand.u32 %v73, 8388607
    %v75 = vor.u32 %v74, 8388608
    %v76 = vsub.s32 0, %v75
    %v77 = vadd.s32 %v72, 1
    %vm78 = vcmp.gt.s32.totalorder %v77, 0
    %v79 = vsel %vm78, %v77, 0
    %v80 = vshrl.u32 %v79, 5
    %v81 = vand.u32 %v79, 31
    %v82 = vsub.s32 32, %v81
    %v83 = vshrl.u32 683565275, %v82
    %v84 = vshll.u32 683565275, %v81
    %v85 = vshrl.u32 2475754826, %v82
    %v86 = vor.u32 %v84, %v85
    %v87 = vshll.u32 2475754826, %v81
    %v88 = vshrl.u32 2131351028, %v82
    %v89 = vor.u32 %v87, %v88
    %v90 = vshll.u32 2131351028, %v81
    %v91 = vshrl.u32 2102212464, %v82
    %v92 = vor.u32 %v90, %v91
    %v93 = vshll.u32 2102212464, %v81
    %v94 = vshrl.u32 920167782, %v82
    %v95 = vor.u32 %v93, %v94
    %v96 = vshll.u32 920167782, %v81
    %v97 = vshrl.u32 1326507024, %v82
    %v98 = vor.u32 %v96, %v97
    %vm99 = vcmp.lt.s32.totalorder %v80, 1
    %vm100 = vcmp.lt.s32.totalorder %v80, 2
    %vm101 = vcmp.lt.s32.totalorder %v80, 3
    %vm102 = vcmp.lt.s32.totalorder %v80, 4
    %v103 = vsel %vm99, %v83, %v86
    %v104 = vsel %vm102, %v92, 2102212464
    %v105 = vsel %vm101, %v89, %v104
    %v106 = vsel %vm100, %v103, %v105
    %v107 = vsel %vm99, %v86, %v89
    %v108 = vsel %vm102, %v95, 920167782
    %v109 = vsel %vm101, %v92, %v108
    %v110 = vsel %vm100, %v107, %v109
    %v111 = vsel %vm99, %v89, %v92
    %v112 = vsel %vm102, %v98, 1326507024
    %v113 = vsel %vm101, %v95, %v112
    %v114 = vsel %vm100, %v111, %v113
    %v115 = vshll.u32 %v75, 8
    %v116 = vmul.u32.u64.compose %v115, %v114
    %v117 = vextract.low.u32 %v116
    %v118 = vextract.high.u32 %v116
    %v119 = vmul.u32.u64.compose %v115, %v110
    %v120 = vextract.low.u32 %v119
    %v121 = vextract.high.u32 %v119
    %v122 = vmul.u32 %v115, %v106
    %v123 = vadd.s32 %v118, %v120
    %vm124 = vc.u32 %v118, %v120
    %v125 = vadd.s32 %v121, 1
    %v126 = vsel %vm124, %v125, %v121
    %v127 = vadd.s32 %v122, %v126
    %v128 = vadd.s32 %v127, 536870912
    %v129 = vshrl.u32 %v128, 30
    %v130 = vshll.u32 %v129, 30
    %v131 = vsub.s32 %v127, %v130
    %vm132 = vcmp.lt.s32.totalorder %v131, 0
    %v133 = vsub.s32 0, %v131
    %v134 = vsel %vm132, %v133, %v131
    %v135 = vclz %v134
    %v136 = vsub.s32 %v135, 2
    %vm137 = vcmp.gt.s32.totalorder 0, %v136
    %v138 = vsel %vm137, 0, %v136
    %v139 = vsub.s32 32, %v138
    %v140 = vshll.u32 %v131, %v138
    %v141 = vshrl.u32 %v123, %v139
    %v142 = vor.u32 %v140, %v141
    %v143 = vsub.s32 4294967266, %v138
    %v144 = vadd.s32 %v143, 127
    %v145 = vshll.u32 %v144, 23
    %v146 = vor.u32 4788187, %v145
    %v147 = vand.u32 2147483647, %v146
    %v149 = vcvt.s32.f32 %v142
    %v150 = vmul.f32 %v149, %v147
    %v151 = vxor.u32 %v150, 2147483648
    %v152 = vsel %vm69, %v151, %v150
    %v153 = vsub.s32 4, %v129
    %v154 = vsel %vm69, %v153, %v129
    %v155 = vsel %vm68, %v66, %v152
    %v156 = vsel %vm68, 0, %v154
    %v157 = vcosq.f32.pop %v155
    %v158 = vsinq.f32.pop %v155
    %vm159 = vweird.f32 %v66
    %v160 = vand.u32 %v156, 3
    %vm161 = vcmp.lt.s32.totalorder %v160, 2
    %vm162 = vcmp.eq.s32.totalorder %v160, 0
    %v163 = vxor.u32 %v158, 2147483648
    %v164 = vsel %vm162, %v157, %v163
    %vm165 = vcmp.eq.s32.totalorder %v160, 2
    %v166 = vxor.u32 %v157, 2147483648
    %v167 = vsel %vm165, %v166, %v158
    %v168 = vsel %vm161, %v164, %v167
    %v169 = vsel %vm159, nan, %v168
    %v170 = vmul.f32 %v65, %v169
    %v171 = vand.u32 2147483647, %v66
    %vm172 = vcmp.le.f32.partialorder %v171, 0.7853982
    %vm173 = vcmp.lt.s32.totalorder %v66, 0
    %v174 = vand.u32 %v66, 2139095040
    %v175 = vshrl.u32 %v174, 23
    %v176 = vsub.s32 %v175, 127
    %v177 = vand.u32 2147483647, %v66
    %v178 = vand.u32 %v177, 8388607
    %v179 = vor.u32 %v178, 8388608
    %v180 = vsub.s32 0, %v179
    %v181 = vadd.s32 %v176, 1
    %vm182 = vcmp.gt.s32.totalorder %v181, 0
    %v183 = vsel %vm182, %v181, 0
    %v184 = vshrl.u32 %v183, 5
    %v185 = vand.u32 %v183, 31
    %v186 = vsub.s32 32, %v185
    %v187 = vshrl.u32 683565275, %v186
    %v188 = vshll.u32 683565275, %v185
    %v189 = vshrl.u32 2475754826, %v186
    %v190 = vor.u32 %v188, %v189
    %v191 = vshll.u32 2475754826, %v185
    %v192 = vshrl.u32 2131351028, %v186
    %v193 = vor.u32 %v191, %v192
    %v194 = vshll.u32 2131351028, %v185
    %v195 = vshrl.u32 2102212464, %v186
    %v196 = vor.u32 %v194, %v195
    %v197 = vshll.u32 2102212464, %v185
    %v198 = vshrl.u32 920167782, %v186
    %v199 = vor.u32 %v197, %v198
    %v200 = vshll.u32 920167782, %v185
    %v201 = vshrl.u32 1326507024, %v186
    %v202 = vor.u32 %v200, %v201
    %vm203 = vcmp.lt.s32.totalorder %v184, 1
    %vm204 = vcmp.lt.s32.totalorder %v184, 2
    %vm205 = vcmp.lt.s32.totalorder %v184, 3
    %vm206 = vcmp.lt.s32.totalorder %v184, 4
    %v207 = vsel %vm203, %v187, %v190
    %v208 = vsel %vm206, %v196, 2102212464
    %v209 = vsel %vm205, %v193, %v208
    %v210 = vsel %vm204, %v207, %v209
    %v211 = vsel %vm203, %v190, %v193
    %v212 = vsel %vm206, %v199, 920167782
    %v213 = vsel %vm205, %v196, %v212
    %v214 = vsel %vm204, %v211, %v213
    %v215 = vsel %vm203, %v193, %v196
    %v216 = vsel %vm206, %v202, 1326507024
    %v217 = vsel %vm205, %v199, %v216
    %v218 = vsel %vm204, %v215, %v217
    %v219 = vshll.u32 %v179, 8
    %v220 = vmul.u32.u64.compose %v219, %v218
    %v221 = vextract.low.u32 %v220
    %v222 = vextract.high.u32 %v220
    %v223 = vmul.u32.u64.compose %v219, %v214
    %v224 = vextract.low.u32 %v223
    %v225 = vextract.high.u32 %v223
    %v226 = vmul.u32 %v219, %v210
    %v227 = vadd.s32 %v222, %v224
    %vm228 = vc.u32 %v222, %v224
    %v229 = vadd.s32 %v225, 1
    %v230 = vsel %vm228, %v229, %v225
    %v231 = vadd.s32 %v226, %v230
    %v232 = vadd.s32 %v231, 536870912
    %v233 = vshrl.u32 %v232, 30
    %v234 = vshll.u32 %v233, 30
    %v235 = vsub.s32 %v231, %v234
    %vm236 = vcmp.lt.s32.totalorder %v235, 0
    %v237 = vsub.s32 0, %v235
    %v238 = vsel %vm236, %v237, %v235
    %v239 = vclz %v238
    %v240 = vsub.s32 %v239, 2
    %vm241 = vcmp.gt.s32.totalorder 0, %v240
    %v242 = vsel %vm241, 0, %v240
    %v243 = vsub.s32 32, %v242
    %v244 = vshll.u32 %v235, %v242
    %v245 = vshrl.u32 %v227, %v243
    %v246 = vor.u32 %v244, %v245
    %v247 = vsub.s32 4294967266, %v242
    %v248 = vadd.s32 %v247, 127
    %v249 = vshll.u32 %v248, 23
    %v250 = vor.u32 4788187, %v249
    %v251 = vand.u32 2147483647, %v250
    %v253 = vcvt.s32.f32 %v246
    %v254 = vmul.f32 %v253, %v251
    %v255 = vxor.u32 %v254, 2147483648
    %v256 = vsel %vm173, %v255, %v254
    %v257 = vsub.s32 4, %v233
    %v258 = vsel %vm173, %v257, %v233
    %v259 = vsel %vm172, %v66, %v256
    %v260 = vsel %vm172, 0, %v258
    %v261 = vcosq.f32.pop %v259
    %v262 = vsinq.f32.pop %v259
    %vm263 = vweird.f32 %v66
    %v264 = vadd.s32 %v260, 3
    %v265 = vand.u32 %v264, 3
    %vm266 = vcmp.lt.s32.totalorder %v265, 2
    %vm267 = vcmp.eq.s32.totalorder %v265, 0
    %v268 = vxor.u32 %v262, 2147483648
    %v269 = vsel %vm267, %v261, %v268
    %vm270 = vcmp.eq.s32.totalorder %v265, 2
    %v271 = vxor.u32 %v261, 2147483648
    %v272 = vsel %vm270, %v271, %v262
    %v273 = vsel %vm266, %v269, %v272
    %v274 = vsel %vm263, nan, %v273
    %v275 = vmul.f32 %v65, %v274
    %v276 = vld [vmem:[#allocation2] sm:$0xff]
    %v277 = vld [vmem:[#allocation2 + $0x8] sm:$0xff]
    %v278 = vmul.f32 %v170, 0.1
    %v279 = vadd.f32 %v276, %v278
    %280 = vst [vmem:[#allocation5] sm:$0xff] %v279
    %v281 = vmul.f32 %v275, 0.1
    %v282 = vadd.f32 %v277, %v281
    %283 = vst [vmem:[#allocation5 + $0x8] sm:$0xff] %v282
    // Predicated region
    $region10: #{tpu_custom_call.1} parent=1 // pred_check
      _
    $region11: #{tpu_custom_call.1} parent=1 // pred_check_branch
      %285 = sbr.rel (0) target = $region13
    $region12: #{tpu_custom_call.1} parent=1 // pred_region
      %s287 = ssub.s32 256, 256
      %288 = vsyncadd [#allocation4], %s287
      %s290 = sshll.u32 [#allocation5], 4
      %s291 = int_to_ptr.vmem [resolvable:$true] %s290
      %293 = dma.vmem_to_hbm [thread:$0]  %s291, 256, %s1, [#allocation4]
    $region13: #{tpu_custom_call.1} parent=1 // pred_fallthru
      _
    // Predicated region
    $region14: #{tpu_custom_call.1} parent=1 // pred_check
      _
    $region15: #{tpu_custom_call.1} parent=1 // pred_check_branch
      %295 = sbr.rel (0) target = $region17
    $region16: #{tpu_custom_call.1} parent=1 // pred_region
      %296 = dma.done [#allocation4], 256
    $region17: #{tpu_custom_call.1} parent=1 // pred_fallthru
      _
    %297 = vsyncpa [#allocation3], 1
    %298 = vsyncpa [#allocation4], 1

</llo_original>
